<compile_context>
chip_gen: v6e
topology: v6e:2x2x1
jax: 0.10.0
libtpu: 0.0.40
codegen_flags: <defaults>
</compile_context>

<pallas_src>
import jax
import jax.numpy as jnp
from jax import lax
from jax.experimental import pallas as pl
from jax.experimental.pallas import tpu as pltpu

# ---------------- configuration (small, synthetic) ----------------
BATCH = 8
ENC = 32                 # feat_encode_size
NUM_FEATS = 3            # numeric feature columns ("f_age", "f_income", "f_score")
KEY_CAPS = (16, 24)      # embed keys ("k_item", "k_user") capacities
NUM_KEYS = len(KEY_CAPS)
NUM_FIELDS = NUM_FEATS + NUM_KEYS
FLAT = NUM_FIELDS * ENC  # flattened field size = F * E = 160
HIDDEN = 64              # backbone hidden size
HIDDEN_PAD = 128         # lane-dense padded hidden width (zero pad, exact)
OUT_SIZE = 1             # regression -> squeeze(-1) yields [B]
TB_MAX = 512             # batch tile cap


# ---------------- single fused kernel ----------------
def tabnn_fused_kernel(x_ref,              # VMEM [tb, NUM_FEATS]  f32
                       ids_ref,            # VMEM [tb, NUM_KEYS]   i32
                       fw_ref, fb_ref,     # VMEM [NUM_FEATS, ENC] each
                       emb0_ref, emb1_ref, # VMEM [cap_k, ENC]
                       w1_ref, b1_ref,     # VMEM [FLAT, HIDDEN_PAD], [1, HIDDEN_PAD]
                       w2r_ref,            # VMEM [1, HIDDEN_PAD]  (W2 as a row, padded)
                       o_ref):             # VMEM [1, 1, tb]
    tb = x_ref.shape[0]

    # First-layer accumulator lives in vregs (f32); one small MXU matmul per
    # field, no [tb, FLAT] intermediate slab.
    z = jnp.zeros((tb, HIDDEN_PAD), jnp.float32)

    # --- FeatDictEncoder fields: H_f = x[:, f] * W_f + b_f ; z += H_f @ W1_f ---
    for f in range(NUM_FEATS):
        xf = x_ref[:, pl.ds(f, 1)]                                   # [tb, 1]
        hf = xf * fw_ref[pl.ds(f, 1), :] + fb_ref[pl.ds(f, 1), :]    # [tb, ENC]
        z += jnp.dot(hf, w1_ref[pl.ds(f * ENC, ENC), :],
                     preferred_element_type=jnp.float32)

    # --- IdDictEncoder fields: one-hot MXU gather, folded into the first layer ---
    emb_refs = (emb0_ref, emb1_ref)
    for k in range(NUM_KEYS):
        cap = KEY_CAPS[k]
        idk = ids_ref[:, pl.ds(k, 1)]                                # [tb, 1] i32
        onehot = (lax.broadcasted_iota(jnp.int32, (tb, cap), 1) == idk
                  ).astype(jnp.float32)                              # [tb, cap]
        hk = jnp.dot(onehot, emb_refs[k][...],
                     preferred_element_type=jnp.float32)             # [tb, ENC]
        z += jnp.dot(hk, w1_ref[pl.ds((NUM_FEATS + k) * ENC, ENC), :],
                     preferred_element_type=jnp.float32)

    # --- hidden activation (padded columns are exactly zero) ---
    z = jnp.maximum(z + b1_ref[...], 0.0)                            # [tb, HIDDEN_PAD]

    # --- N=1 output projection with batch on lanes: [1,H] @ [H,tb]^T -> [1,tb]
    #     (lane-dense store; b2 is added in the wrapper) ---
    res = lax.dot_general(w2r_ref[...], z,
                          dimension_numbers=(((1,), (1,)), ((), ())),
                          preferred_element_type=jnp.float32)        # [1, tb]
    o_ref[...] = res.reshape(1, 1, tb)


# ---------------- TabNN forward (wrapper) ----------------
def tabnn_forward(params, feat_x, key_ids, *, tb_max=TB_MAX):
    """
    feat_x:  [B, NUM_FEATS] float32   (numeric feature columns, sorted-name order)
    key_ids: [B, NUM_KEYS]  int       (id columns, sorted-name order)
    returns: [B]            float32
    """
    B = feat_x.shape[0]
    tb = min(B, tb_max)
    n_blocks = -(-B // tb)            # cdiv
    Bp = n_blocks * tb
    if Bp != B:                       # zero-pad ragged batches (sliced off below)
        feat_x = jnp.pad(feat_x, ((0, Bp - B), (0, 0)))
        key_ids = jnp.pad(key_ids, ((0, Bp - B), (0, 0)))

    # Clamp ids: VMEM refs have no bounds check; clamping also matches the
    # "valid embedding row" contract of nn.Embedding.
    caps = jnp.asarray(KEY_CAPS, jnp.int32)
    key_ids = jnp.clip(key_ids.astype(jnp.int32), 0, caps[None, :] - 1)

    # Lane-pad HIDDEN 64 -> 128 (zeros: exact) and lay W2 out as a row.
    w1p = jnp.pad(params["w1"], ((0, 0), (0, HIDDEN_PAD - HIDDEN)))
    b1p = jnp.pad(params["b1"], ((0, 0), (0, HIDDEN_PAD - HIDDEN)))
    w2rowp = jnp.pad(params["w2"].reshape(1, HIDDEN),
                     ((0, 0), (0, HIDDEN_PAD - HIDDEN)))

    out3d = pl.pallas_call(
        tabnn_fused_kernel,
        out_shape=jax.ShapeDtypeStruct((n_blocks, 1, tb), jnp.float32),
        grid_spec=pltpu.PrefetchScalarGridSpec(
            num_scalar_prefetch=0,
            grid=(n_blocks,),
            in_specs=[
                pl.BlockSpec((tb, NUM_FEATS), lambda i: (i, 0)),      # feat_x
                pl.BlockSpec((tb, NUM_KEYS), lambda i: (i, 0)),       # key ids
                pl.BlockSpec((NUM_FEATS, ENC), lambda i: (0, 0)),     # feat_w
                pl.BlockSpec((NUM_FEATS, ENC), lambda i: (0, 0)),     # feat_b
                pl.BlockSpec((KEY_CAPS[0], ENC), lambda i: (0, 0)),   # emb 0
                pl.BlockSpec((KEY_CAPS[1], ENC), lambda i: (0, 0)),   # emb 1
                pl.BlockSpec((FLAT, HIDDEN_PAD), lambda i: (0, 0)),   # w1 (padded)
                pl.BlockSpec((1, HIDDEN_PAD), lambda i: (0, 0)),      # b1 (padded)
                pl.BlockSpec((1, HIDDEN_PAD), lambda i: (0, 0)),      # w2 row (padded)
            ],
            out_specs=pl.BlockSpec((1, 1, tb), lambda i: (i, 0, 0)),
        ),
        compiler_params=pltpu.CompilerParams(
            dimension_semantics=("parallel",),     # batch blocks shard across TCs
        ),
    )(feat_x, key_ids, params["feat_w"], params["feat_b"],
      params["emb"][0], params["emb"][1], w1p, b1p, w2rowp)

    # b2 added here (scalar), pad rows sliced off; equivalent to .squeeze(-1).
    return out3d.reshape(Bp)[:B] + params["b2"][0, 0]


# ---------------- deterministic parameter init ----------------
def init_params(key):
    ks = jax.random.split(key, 6 + NUM_KEYS)
    return {
        "feat_w": jax.random.normal(ks[0], (NUM_FEATS, ENC), jnp.float32) * 0.1,
        "feat_b": jax.random.normal(ks[1], (NUM_FEATS, ENC), jnp.float32) * 0.01,
        "w1": jax.random.normal(ks[2], (FLAT, HIDDEN), jnp.float32) * 0.05,
        "b1": jnp.zeros((1, HIDDEN), jnp.float32),
        "w2": jax.random.normal(ks[3], (HIDDEN, OUT_SIZE), jnp.float32) * 0.05,
        "b2": jnp.zeros((1, OUT_SIZE), jnp.float32),
        "emb": [
            jax.random.normal(ks[6 + k], (KEY_CAPS[k], ENC), jnp.float32) * 0.1
            for k in range(NUM_KEYS)
        ],
    }


# TODO(synk): exact FeatDictEncoder/IdDictEncoder internals (e.g. text/categorical
# sub-encoders) are not in the provided source; scalar-linear encode + embedding
# lookup are implemented per the standard dbinfer tabular path.

if __name__ == "__main__":
    root = jax.random.PRNGKey(0)
    pkey, xkey, ikey = jax.random.split(root, 3)

    params = init_params(pkey)
    feat_x = jax.random.normal(xkey, (BATCH, NUM_FEATS), jnp.float32)
    key_ids = jnp.stack(
        [
            jax.random.randint(jax.random.fold_in(ikey, k), (BATCH,), 0, KEY_CAPS[k])
            for k in range(NUM_KEYS)
        ],
        axis=1,
    ).astype(jnp.int32)

    fwd = jax.jit(tabnn_forward)
    out = jax.block_until_ready(fwd(params, feat_x, key_ids))
    assert out.shape == (BATCH,)

    # cross-check against pure-JAX reference
    h_feat_ref = feat_x[:, :, None] * params["feat_w"][None] + params["feat_b"][None]
    h_keys_ref = jnp.stack(
        [jnp.take(params["emb"][k], key_ids[:, k], axis=0) for k in range(NUM_KEYS)],
        axis=1,
    )
    H_ref = jnp.concatenate([h_feat_ref, h_keys_ref], axis=1).reshape(BATCH, -1)
    z_ref = jnp.maximum(H_ref @ params["w1"] + params["b1"], 0.0)
    out_ref = jnp.squeeze(z_ref @ params["w2"] + params["b2"], axis=-1)
    assert jnp.allclose(out, out_ref, atol=1e-5, rtol=1e-5), (out, out_ref)

    print("KERNEL_OK")
</pallas_src>

<mosaic_0001>
module attributes {stable_mosaic.version = 11 : i64} {
  func.func @tabnn_fused_kernel(%arg0: i32, %arg1: memref<8x3xf32, #tpu.memory_space<vmem>>, %arg2: memref<8x2xi32, #tpu.memory_space<vmem>>, %arg3: memref<3x32xf32, #tpu.memory_space<vmem>>, %arg4: memref<3x32xf32, #tpu.memory_space<vmem>>, %arg5: memref<16x32xf32, #tpu.memory_space<vmem>>, %arg6: memref<24x32xf32, #tpu.memory_space<vmem>>, %arg7: memref<160x128xf32, #tpu.memory_space<vmem>>, %arg8: memref<1x128xf32, #tpu.memory_space<vmem>>, %arg9: memref<1x128xf32, #tpu.memory_space<vmem>>, %arg10: memref<1x1x8xf32, #tpu.memory_space<vmem>>) attributes {dimension_semantics = [#tpu.dimension_semantics<parallel>], iteration_bounds = array<i64: 1>, scalar_prefetch = 0 : i64, scratch_operands = 0 : i64, tpu.core_type = #tpu.core_type<tc>, window_params = [{transform_indices = @transform_0, window_bounds = array<i64: 8, 3>}, {transform_indices = @transform_1, window_bounds = array<i64: 8, 2>}, {pipeline_mode = #tpu.pipeline_mode<synchronous>, transform_indices = @transform_2, window_bounds = array<i64: 3, 32>}, {pipeline_mode = #tpu.pipeline_mode<synchronous>, transform_indices = @transform_3, window_bounds = array<i64: 3, 32>}, {pipeline_mode = #tpu.pipeline_mode<synchronous>, transform_indices = @transform_4, window_bounds = array<i64: 16, 32>}, {pipeline_mode = #tpu.pipeline_mode<synchronous>, transform_indices = @transform_5, window_bounds = array<i64: 24, 32>}, {pipeline_mode = #tpu.pipeline_mode<synchronous>, transform_indices = @transform_6, window_bounds = array<i64: 160, 128>}, {pipeline_mode = #tpu.pipeline_mode<synchronous>, transform_indices = @transform_7, window_bounds = array<i64: 1, 128>}, {pipeline_mode = #tpu.pipeline_mode<synchronous>, transform_indices = @transform_8, window_bounds = array<i64: 1, 128>}, {transform_indices = @transform_9, window_bounds = array<i64: 1, 1, 8>}]} {
    %cst = arith.constant 0.000000e+00 : f32
    %0 = vector.broadcast %cst : f32 to vector<8x128xf32>
    %c0 = arith.constant 0 : index
    %c0_0 = arith.constant 0 : index
    %1 = vector.load %arg1[%c0, %c0_0] : memref<8x3xf32, #tpu.memory_space<vmem>>, vector<8x1xf32>
    %c0_1 = arith.constant 0 : index
    %c0_2 = arith.constant 0 : index
    %2 = vector.load %arg3[%c0_1, %c0_2] : memref<3x32xf32, #tpu.memory_space<vmem>>, vector<1x32xf32>
    %3 = vector.broadcast %1 : vector<8x1xf32> to vector<8x32xf32>
    %4 = vector.broadcast %2 : vector<1x32xf32> to vector<8x32xf32>
    %5 = arith.mulf %3, %4 : vector<8x32xf32>
    %c0_3 = arith.constant 0 : index
    %c0_4 = arith.constant 0 : index
    %6 = vector.load %arg4[%c0_3, %c0_4] : memref<3x32xf32, #tpu.memory_space<vmem>>, vector<1x32xf32>
    %7 = vector.broadcast %6 : vector<1x32xf32> to vector<8x32xf32>
    %8 = arith.addf %5, %7 : vector<8x32xf32>
    %c0_5 = arith.constant 0 : index
    %c0_6 = arith.constant 0 : index
    %9 = vector.load %arg7[%c0_5, %c0_6] : memref<160x128xf32, #tpu.memory_space<vmem>>, vector<32x128xf32>
    %cst_7 = arith.constant dense<0.000000e+00> : vector<8x128xf32>
    %10 = tpu.matmul %8, %9, %cst_7 {dimension_numbers = #tpu.dot_dimension_numbers<[1], [0], [0], [1], [0, 0, 1, 1], [], []>} : vector<8x32xf32>, vector<32x128xf32>, vector<8x128xf32> -> vector<8x128xf32>
    %11 = arith.addf %0, %10 : vector<8x128xf32>
    %c0_8 = arith.constant 0 : index
    %c1 = arith.constant 1 : index
    %12 = vector.load %arg1[%c0_8, %c1] : memref<8x3xf32, #tpu.memory_space<vmem>>, vector<8x1xf32>
    %c1_9 = arith.constant 1 : index
    %c0_10 = arith.constant 0 : index
    %13 = vector.load %arg3[%c1_9, %c0_10] : memref<3x32xf32, #tpu.memory_space<vmem>>, vector<1x32xf32>
    %14 = vector.broadcast %12 : vector<8x1xf32> to vector<8x32xf32>
    %15 = vector.broadcast %13 : vector<1x32xf32> to vector<8x32xf32>
    %16 = arith.mulf %14, %15 : vector<8x32xf32>
    %c1_11 = arith.constant 1 : index
    %c0_12 = arith.constant 0 : index
    %17 = vector.load %arg4[%c1_11, %c0_12] : memref<3x32xf32, #tpu.memory_space<vmem>>, vector<1x32xf32>
    %18 = vector.broadcast %17 : vector<1x32xf32> to vector<8x32xf32>
    %19 = arith.addf %16, %18 : vector<8x32xf32>
    %c32 = arith.constant 32 : index
    %c0_13 = arith.constant 0 : index
    %20 = vector.load %arg7[%c32, %c0_13] : memref<160x128xf32, #tpu.memory_space<vmem>>, vector<32x128xf32>
    %cst_14 = arith.constant dense<0.000000e+00> : vector<8x128xf32>
    %21 = tpu.matmul %19, %20, %cst_14 {dimension_numbers = #tpu.dot_dimension_numbers<[1], [0], [0], [1], [0, 0, 1, 1], [], []>} : vector<8x32xf32>, vector<32x128xf32>, vector<8x128xf32> -> vector<8x128xf32>
    %22 = arith.addf %11, %21 : vector<8x128xf32>
    %c0_15 = arith.constant 0 : index
    %c2 = arith.constant 2 : index
    %23 = vector.load %arg1[%c0_15, %c2] : memref<8x3xf32, #tpu.memory_space<vmem>>, vector<8x1xf32>
    %c2_16 = arith.constant 2 : index
    %c0_17 = arith.constant 0 : index
    %24 = vector.load %arg3[%c2_16, %c0_17] : memref<3x32xf32, #tpu.memory_space<vmem>>, vector<1x32xf32>
    %25 = vector.broadcast %23 : vector<8x1xf32> to vector<8x32xf32>
    %26 = vector.broadcast %24 : vector<1x32xf32> to vector<8x32xf32>
    %27 = arith.mulf %25, %26 : vector<8x32xf32>
    %c2_18 = arith.constant 2 : index
    %c0_19 = arith.constant 0 : index
    %28 = vector.load %arg4[%c2_18, %c0_19] : memref<3x32xf32, #tpu.memory_space<vmem>>, vector<1x32xf32>
    %29 = vector.broadcast %28 : vector<1x32xf32> to vector<8x32xf32>
    %30 = arith.addf %27, %29 : vector<8x32xf32>
    %c64 = arith.constant 64 : index
    %c0_20 = arith.constant 0 : index
    %31 = vector.load %arg7[%c64, %c0_20] : memref<160x128xf32, #tpu.memory_space<vmem>>, vector<32x128xf32>
    %cst_21 = arith.constant dense<0.000000e+00> : vector<8x128xf32>
    %32 = tpu.matmul %30, %31, %cst_21 {dimension_numbers = #tpu.dot_dimension_numbers<[1], [0], [0], [1], [0, 0, 1, 1], [], []>} : vector<8x32xf32>, vector<32x128xf32>, vector<8x128xf32> -> vector<8x128xf32>
    %33 = arith.addf %22, %32 : vector<8x128xf32>
    %c0_22 = arith.constant 0 : index
    %c0_23 = arith.constant 0 : index
    %34 = vector.load %arg2[%c0_22, %c0_23] : memref<8x2xi32, #tpu.memory_space<vmem>>, vector<8x1xi32>
    %35 = tpu.iota {dimensions = array<i32: 1>} : vector<8x16xi32>
    %36 = vector.broadcast %34 : vector<8x1xi32> to vector<8x16xi32>
    %37 = arith.cmpi eq, %35, %36 : vector<8x16xi32>
    %38 = arith.extui %37 : vector<8x16xi1> to vector<8x16xi32>
    %39 = arith.sitofp %38 : vector<8x16xi32> to vector<8x16xf32>
    %c0_24 = arith.constant 0 : index
    %c0_25 = arith.constant 0 : index
    %40 = vector.load %arg5[%c0_24, %c0_25] : memref<16x32xf32, #tpu.memory_space<vmem>>, vector<16x32xf32>
    %cst_26 = arith.constant dense<0.000000e+00> : vector<8x32xf32>
    %41 = tpu.matmul %39, %40, %cst_26 {dimension_numbers = #tpu.dot_dimension_numbers<[1], [0], [0], [1], [0, 0, 1, 1], [], []>} : vector<8x16xf32>, vector<16x32xf32>, vector<8x32xf32> -> vector<8x32xf32>
    %c96 = arith.constant 96 : index
    %c0_27 = arith.constant 0 : index
    %42 = vector.load %arg7[%c96, %c0_27] : memref<160x128xf32, #tpu.memory_space<vmem>>, vector<32x128xf32>
    %cst_28 = arith.constant dense<0.000000e+00> : vector<8x128xf32>
    %43 = tpu.matmul %41, %42, %cst_28 {dimension_numbers = #tpu.dot_dimension_numbers<[1], [0], [0], [1], [0, 0, 1, 1], [], []>} : vector<8x32xf32>, vector<32x128xf32>, vector<8x128xf32> -> vector<8x128xf32>
    %44 = arith.addf %33, %43 : vector<8x128xf32>
    %c0_29 = arith.constant 0 : index
    %c1_30 = arith.constant 1 : index
    %45 = vector.load %arg2[%c0_29, %c1_30] : memref<8x2xi32, #tpu.memory_space<vmem>>, vector<8x1xi32>
    %46 = tpu.iota {dimensions = array<i32: 1>} : vector<8x24xi32>
    %47 = vector.broadcast %45 : vector<8x1xi32> to vector<8x24xi32>
    %48 = arith.cmpi eq, %46, %47 : vector<8x24xi32>
    %49 = arith.extui %48 : vector<8x24xi1> to vector<8x24xi32>
    %50 = arith.sitofp %49 : vector<8x24xi32> to vector<8x24xf32>
    %c0_31 = arith.constant 0 : index
    %c0_32 = arith.constant 0 : index
    %51 = vector.load %arg6[%c0_31, %c0_32] : memref<24x32xf32, #tpu.memory_space<vmem>>, vector<24x32xf32>
    %cst_33 = arith.constant dense<0.000000e+00> : vector<8x32xf32>
    %52 = tpu.matmul %50, %51, %cst_33 {dimension_numbers = #tpu.dot_dimension_numbers<[1], [0], [0], [1], [0, 0, 1, 1], [], []>} : vector<8x24xf32>, vector<24x32xf32>, vector<8x32xf32> -> vector<8x32xf32>
    %c128 = arith.constant 128 : index
    %c0_34 = arith.constant 0 : index
    %53 = vector.load %arg7[%c128, %c0_34] : memref<160x128xf32, #tpu.memory_space<vmem>>, vector<32x128xf32>
    %cst_35 = arith.constant dense<0.000000e+00> : vector<8x128xf32>
    %54 = tpu.matmul %52, %53, %cst_35 {dimension_numbers = #tpu.dot_dimension_numbers<[1], [0], [0], [1], [0, 0, 1, 1], [], []>} : vector<8x32xf32>, vector<32x128xf32>, vector<8x128xf32> -> vector<8x128xf32>
    %55 = arith.addf %44, %54 : vector<8x128xf32>
    %c0_36 = arith.constant 0 : index
    %c0_37 = arith.constant 0 : index
    %56 = vector.load %arg8[%c0_36, %c0_37] : memref<1x128xf32, #tpu.memory_space<vmem>>, vector<1x128xf32>
    %57 = vector.broadcast %56 : vector<1x128xf32> to vector<8x128xf32>
    %58 = arith.addf %55, %57 : vector<8x128xf32>
    %cst_38 = arith.constant 0.000000e+00 : f32
    %59 = vector.broadcast %cst_38 : f32 to vector<8x128xf32>
    %60 = arith.maximumf %58, %59 : vector<8x128xf32>
    %c0_39 = arith.constant 0 : index
    %c0_40 = arith.constant 0 : index
    %61 = vector.load %arg9[%c0_39, %c0_40] : memref<1x128xf32, #tpu.memory_space<vmem>>, vector<1x128xf32>
    %cst_41 = arith.constant dense<0.000000e+00> : vector<1x8xf32>
    %62 = tpu.matmul %61, %60, %cst_41 {dimension_numbers = #tpu.dot_dimension_numbers<[1], [1], [0], [0], [0, 0, 1, 0], [], []>} : vector<1x128xf32>, vector<8x128xf32>, vector<1x8xf32> -> vector<1x8xf32>
    %63 = vector.shape_cast %62 : vector<1x8xf32> to vector<1x1x8xf32>
    %c0_42 = arith.constant 0 : index
    %c0_43 = arith.constant 0 : index
    %c0_44 = arith.constant 0 : index
    %64 = vector.load %arg10[%c0_42, %c0_43, %c0_44] : memref<1x1x8xf32, #tpu.memory_space<vmem>>, vector<1x1x8xf32>
    tpu.vector_store %arg10[%c0_42, %c0_43, %c0_44], %63 {strides = array<i32>} : memref<1x1x8xf32, #tpu.memory_space<vmem>>, vector<1x1x8xf32>,
    return
  }
  func.func @transform_0(%arg0: i32) -> (i32, i32) {
    %c0_i32 = arith.constant 0 : i32
    %c0_i32_0 = arith.constant 0 : i32
    return %arg0, %c0_i32 : i32, i32
  }
  func.func @transform_1(%arg0: i32) -> (i32, i32) {
    %c0_i32 = arith.constant 0 : i32
    %c0_i32_0 = arith.constant 0 : i32
    return %arg0, %c0_i32 : i32, i32
  }
  func.func @transform_2(%arg0: i32) -> (i32, i32) {
    %c0_i32 = arith.constant 0 : i32
    %c0_i32_0 = arith.constant 0 : i32
    %c0_i32_1 = arith.constant 0 : i32
    return %c0_i32, %c0_i32_0 : i32, i32
  }
  func.func @transform_3(%arg0: i32) -> (i32, i32) {
    %c0_i32 = arith.constant 0 : i32
    %c0_i32_0 = arith.constant 0 : i32
    %c0_i32_1 = arith.constant 0 : i32
    return %c0_i32, %c0_i32_0 : i32, i32
  }
  func.func @transform_4(%arg0: i32) -> (i32, i32) {
    %c0_i32 = arith.constant 0 : i32
    %c0_i32_0 = arith.constant 0 : i32
    %c0_i32_1 = arith.constant 0 : i32
    return %c0_i32, %c0_i32_0 : i32, i32
  }
  func.func @transform_5(%arg0: i32) -> (i32, i32) {
    %c0_i32 = arith.constant 0 : i32
    %c0_i32_0 = arith.constant 0 : i32
    %c0_i32_1 = arith.constant 0 : i32
    return %c0_i32, %c0_i32_0 : i32, i32
  }
  func.func @transform_6(%arg0: i32) -> (i32, i32) {
    %c0_i32 = arith.constant 0 : i32
    %c0_i32_0 = arith.constant 0 : i32
    %c0_i32_1 = arith.constant 0 : i32
    return %c0_i32, %c0_i32_0 : i32, i32
  }
  func.func @transform_7(%arg0: i32) -> (i32, i32) {
    %c0_i32 = arith.constant 0 : i32
    %c0_i32_0 = arith.constant 0 : i32
    %c0_i32_1 = arith.constant 0 : i32
    return %c0_i32, %c0_i32_0 : i32, i32
  }
  func.func @transform_8(%arg0: i32) -> (i32, i32) {
    %c0_i32 = arith.constant 0 : i32
    %c0_i32_0 = arith.constant 0 : i32
    %c0_i32_1 = arith.constant 0 : i32
    return %c0_i32, %c0_i32_0 : i32, i32
  }
  func.func @transform_9(%arg0: i32) -> (i32, i32, i32) {
    %c0_i32 = arith.constant 0 : i32
    %c0_i32_0 = arith.constant 0 : i32
    %c0_i32_1 = arith.constant 0 : i32
    return %arg0, %c0_i32, %c0_i32_0 : i32, i32, i32
  }
}

</mosaic_0001>

<llo_original>
// kernel: tabnn_forward.1
$region0: #{tabnn_forward.1}
  #allocation0 [shape = 'u32[]', space=smem, size = 0x4, offset = 0x4, fixed_abs, tag = 'smem constant byte address 0x4 - core index']
  #allocation1 [shape = 'u32[144,128]{1,0:T(1,128)}', space=vmem, size = 0x12000, scoped, tag = 'internal scratch']
  %s0 = inlined_call_operand.vmem [shape: f32[8,3], index: 0, kind: input, shape index: {}]
  %s1 = inlined_call_operand.vmem [shape: s32[8,2], index: 1, kind: input, shape index: {}]
  %s2 = inlined_call_operand.vmem [shape: f32[3,32], index: 2, kind: input, shape index: {}]
  %s3 = inlined_call_operand.vmem [shape: f32[3,32], index: 3, kind: input, shape index: {}]
  %s4 = inlined_call_operand.vmem [shape: f32[16,32], index: 4, kind: input, shape index: {}]
  %s5 = inlined_call_operand.vmem [shape: f32[24,32], index: 5, kind: input, shape index: {}]
  %s6 = inlined_call_operand.vmem [shape: f32[160,128], index: 6, kind: input, shape index: {}]
  %s7 = inlined_call_operand.vmem [shape: f32[1,128], index: 7, kind: input, shape index: {}]
  %s8 = inlined_call_operand.vmem [shape: f32[1,128], index: 8, kind: input, shape index: {}]
  %s9 = inlined_call_operand.vmem [shape: f32[1,1,8], index: 9, kind: output, shape index: {}]
  %s10 = sld [smem:[#allocation0]]
  $region46: #{tabnn_forward.1} parent=0
    _
  %s12 = ssub.s32 1, %s10
  %s13 = scalar_select 0, %s12, %s10
  // Predicated region
  $region2: #{tabnn_forward.1} parent=0 // pred_check
    _
  $region3: #{tabnn_forward.1} parent=0 // pred_check_branch
    %15 = sbr.rel (0) target = $region5
  $region4: #{tabnn_forward.1} parent=0 // pred_region
    _
  $region5: #{tabnn_forward.1} parent=0 // pred_fallthru
    _
  // Predicated region
  $region6: #{tabnn_forward.1} parent=0 // pred_check
    _
  $region7: #{tabnn_forward.1} parent=0 // pred_check_branch
    %17 = sbr.rel (0) target = $region9
  $region8: #{tabnn_forward.1} parent=0 // pred_region
    _
  $region9: #{tabnn_forward.1} parent=0 // pred_fallthru
    _
  // Predicated region
  $region10: #{tabnn_forward.1} parent=0 // pred_check
    _
  $region11: #{tabnn_forward.1} parent=0 // pred_check_branch
    %19 = sbr.rel (0) target = $region13
  $region12: #{tabnn_forward.1} parent=0 // pred_region
    _
  $region13: #{tabnn_forward.1} parent=0 // pred_fallthru
    _
  // Predicated region
  $region14: #{tabnn_forward.1} parent=0 // pred_check
    _
  $region15: #{tabnn_forward.1} parent=0 // pred_check_branch
    %21 = sbr.rel (0) target = $region17
  $region16: #{tabnn_forward.1} parent=0 // pred_region
    _
  $region17: #{tabnn_forward.1} parent=0 // pred_fallthru
    _
  // Predicated region
  $region18: #{tabnn_forward.1} parent=0 // pred_check
    _
  $region19: #{tabnn_forward.1} parent=0 // pred_check_branch
    %23 = sbr.rel (0) target = $region21
  $region20: #{tabnn_forward.1} parent=0 // pred_region
    _
  $region21: #{tabnn_forward.1} parent=0 // pred_fallthru
    _
  // Predicated region
  $region22: #{tabnn_forward.1} parent=0 // pred_check
    _
  $region23: #{tabnn_forward.1} parent=0 // pred_check_branch
    %25 = sbr.rel (0) target = $region25
  $region24: #{tabnn_forward.1} parent=0 // pred_region
    _
  $region25: #{tabnn_forward.1} parent=0 // pred_fallthru
    _
  // Predicated region
  $region26: #{tabnn_forward.1} parent=0 // pred_check
    _
  $region27: #{tabnn_forward.1} parent=0 // pred_check_branch
    %27 = sbr.rel (0) target = $region29
  $region28: #{tabnn_forward.1} parent=0 // pred_region
    _
  $region29: #{tabnn_forward.1} parent=0 // pred_fallthru
    _
  // Predicated region
  $region30: #{tabnn_forward.1} parent=0 // pred_check
    _
  $region31: #{tabnn_forward.1} parent=0 // pred_check_branch
    %29 = sbr.rel (0) target = $region33
  $region32: #{tabnn_forward.1} parent=0 // pred_region
    _
  $region33: #{tabnn_forward.1} parent=0 // pred_fallthru
    _
  // Predicated region
  $region34: #{tabnn_forward.1} parent=0 // pred_check
    _
  $region35: #{tabnn_forward.1} parent=0 // pred_check_branch
    %31 = sbr.rel (0) target = $region37
  $region36: #{tabnn_forward.1} parent=0 // pred_region
    _
  $region37: #{tabnn_forward.1} parent=0 // pred_fallthru
    _
  %v32 = vld [vmem:[%s0] sm:$0xff]
  %v33 = vld [vmem:[%s2] sm:$0x1]
  %35 = vset.pattern.permute.xlu0 0
  %36 = vperm.xlu0 %35, %v32
  %v37 = vpop.permute.xlu0 %36
  %v39 = vlaneseq
  %v40 = vshrl.u32 %v39, 7
  %v41 = vsub.s32 0, %v40
  %v42 = vrot.slane %v33, %v41
  %v43 = vmul.f32 %v37, %v42
  %v44 = vld [vmem:[%s3] sm:$0x1]
  %v45 = vlaneseq
  %v46 = vshrl.u32 %v45, 7
  %v47 = vsub.s32 0, %v46
  %v48 = vrot.slane %v44, %v47
  %v49 = vadd.f32 %v43, %v48
  %v50 = vld [vmem:[%s6] sm:$0xff]
  %v51 = vld [vmem:[%s6 + $0x8] sm:$0xff]
  %v52 = vld [vmem:[%s6 + $0x10] sm:$0xff]
  %v53 = vld [vmem:[%s6 + $0x18] sm:$0xff]
  %v54 = vld [vmem:[%s2 + $0x1] sm:$0x1]
  %55 = vset.pattern.permute.xlu0 1
  %56 = vperm.xlu0 %55, %v32
  %v57 = vpop.permute.xlu0 %56
  %v59 = vlaneseq
  %v60 = vshrl.u32 %v59, 7
  %v61 = vsub.s32 0, %v60
  %v62 = vrot.slane %v54, %v61
  %v63 = vmul.f32 %v57, %v62
  %v64 = vld [vmem:[%s3 + $0x1] sm:$0x1]
  %v65 = vlaneseq
  %v66 = vshrl.u32 %v65, 7
  %v67 = vsub.s32 0, %v66
  %v68 = vrot.slane %v64, %v67
  %v69 = vadd.f32 %v63, %v68
  %v70 = vld [vmem:[%s6 + $0x20] sm:$0xff]
  %v71 = vld [vmem:[%s6 + $0x28] sm:$0xff]
  %v72 = vld [vmem:[%s6 + $0x30] sm:$0xff]
  %v73 = vld [vmem:[%s6 + $0x38] sm:$0xff]
  %vm74 = vcmask 261120
  %v76 = vsel %vm74, %v69, 0
  %78 = vmatprep.subr.mxu0 0.0
  %79 = vmatpush1.msra.mxu0 0.0
  %80 = vmatprep.subr.mxu0 0.0
  %81 = vmatpush1.msra.mxu0 0.0
  %82 = vmatprep.subr.mxu0 0.0
  %83 = vmatpush1.msra.mxu0 0.0
  %84 = vmatprep.subr.mxu0 0.0
  %85 = vmatpush1.msra.mxu0 0.0
  %86 = vmatprep.subr.mxu0 0.0
  %87 = vmatpush1.msra.mxu0 0.0
  %88 = vmatprep.subr.mxu0 0.0
  %89 = vmatpush1.msra.mxu0 0.0
  %90 = vmatprep.subr.mxu0 0.0
  %91 = vmatpush1.msra.mxu0 0.0
  %92 = vmatprep.subr.mxu0 0.0
  %93 = vmatpush1.msra.mxu0 0.0
  %94 = vmatprep.subr.mxu0 0.0
  %95 = vmatpush1.msra.mxu0 0.0
  %96 = vmatprep.subr.mxu0 0.0
  %97 = vmatpush1.msra.mxu0 0.0
  %98 = vmatprep.subr.mxu0 0.0
  %99 = vmatpush1.msra.mxu0 0.0
  %100 = vmatprep.subr.mxu0 0.0
  %101 = vmatpush1.msra.mxu0 0.0
  %102 = vmatprep.subr.mxu0 0.0
  %103 = vmatpush1.msra.mxu0 %v73
  %104 = vmatprep.subr.mxu0 0.0
  %105 = vmatpush1.msra.mxu0 %v72
  %106 = vmatprep.subr.mxu0 0.0
  %107 = vmatpush1.msra.mxu0 %v71
  %108 = vmatprep.subr.mxu0 0.0
  %109 = vmatpush1.msra.mxu0 %v70
  %110 = vmatprep.subr.mxu0 0.0
  %111 = vmatpush2.msra.mxu0 0.0
  %112 = vmatprep.subr.mxu0 0.0
  %113 = vmatpush2.msra.mxu0 0.0
  %114 = vmatprep.subr.mxu0 0.0
  %115 = vmatpush2.msra.mxu0 0.0
  %116 = vmatprep.subr.mxu0 0.0
  %117 = vmatpush2.msra.mxu0 0.0
  %118 = vmatprep.subr.mxu0 0.0
  %119 = vmatpush2.msra.mxu0 0.0
  %120 = vmatprep.subr.mxu0 0.0
  %121 = vmatpush2.msra.mxu0 0.0
  %122 = vmatprep.subr.mxu0 0.0
  %123 = vmatpush2.msra.mxu0 0.0
  %124 = vmatprep.subr.mxu0 0.0
  %125 = vmatpush2.msra.mxu0 0.0
  %126 = vmatprep.subr.mxu0 0.0
  %127 = vmatpush2.msra.mxu0 0.0
  %128 = vmatprep.subr.mxu0 0.0
  %129 = vmatpush2.msra.mxu0 0.0
  %130 = vmatprep.subr.mxu0 0.0
  %131 = vmatpush2.msra.mxu0 0.0
  %132 = vmatprep.subr.mxu0 0.0
  %133 = vmatpush2.msra.mxu0 0.0
  %134 = vmatprep.subr.mxu0 0.0
  %135 = vmatpush2.msra.mxu0 0.0
  %136 = vmatprep.subr.mxu0 0.0
  %137 = vmatpush2.msra.mxu0 0.0
  %138 = vmatprep.subr.mxu0 0.0
  %139 = vmatpush2.msra.mxu0 0.0
  %140 = vmatprep.subr.mxu0 0.0
  %141 = vmatpush2.msra.mxu0 0.0
  %142 = vmatprep.mubr.f32.mxu0 0.0
  %143 = vmatmul.mubr.f32.gmra.mxu0 %v76
  %v144 = vpop.f32.mrf.mxu0
  %v145 = vadd.f32 0.0, %v144
  %v146 = vpop.f32.mrf.mxu0
  %147 = vdwg.mxu0
  %v149 = vsel %vm74, %v49, 0
  %151 = vmatprep.subr.mxu0 0.0
  %152 = vmatpush1.msra.mxu0 0.0
  %153 = vmatprep.subr.mxu0 0.0
  %154 = vmatpush1.msra.mxu0 0.0
  %155 = vmatprep.subr.mxu0 0.0
  %156 = vmatpush1.msra.mxu0 0.0
  %157 = vmatprep.subr.mxu0 0.0
  %158 = vmatpush1.msra.mxu0 0.0
  %159 = vmatprep.subr.mxu0 0.0
  %160 = vmatpush1.msra.mxu0 0.0
  %161 = vmatprep.subr.mxu0 0.0
  %162 = vmatpush1.msra.mxu0 0.0
  %163 = vmatprep.subr.mxu0 0.0
  %164 = vmatpush1.msra.mxu0 0.0
  %165 = vmatprep.subr.mxu0 0.0
  %166 = vmatpush1.msra.mxu0 0.0
  %167 = vmatprep.subr.mxu0 0.0
  %168 = vmatpush1.msra.mxu0 0.0
  %169 = vmatprep.subr.mxu0 0.0
  %170 = vmatpush1.msra.mxu0 0.0
  %171 = vmatprep.subr.mxu0 0.0
  %172 = vmatpush1.msra.mxu0 0.0
  %173 = vmatprep.subr.mxu0 0.0
  %174 = vmatpush1.msra.mxu0 0.0
  %175 = vmatprep.subr.mxu0 0.0
  %176 = vmatpush1.msra.mxu0 %v53
  %177 = vmatprep.subr.mxu0 0.0
  %178 = vmatpush1.msra.mxu0 %v52
  %179 = vmatprep.subr.mxu0 0.0
  %180 = vmatpush1.msra.mxu0 %v51
  %181 = vmatprep.subr.mxu0 0.0
  %182 = vmatpush1.msra.mxu0 %v50
  %183 = vmatprep.subr.mxu0 0.0
  %184 = vmatpush2.msra.mxu0 0.0
  %185 = vmatprep.subr.mxu0 0.0
  %186 = vmatpush2.msra.mxu0 0.0
  %187 = vmatprep.subr.mxu0 0.0
  %188 = vmatpush2.msra.mxu0 0.0
  %189 = vmatprep.subr.mxu0 0.0
  %190 = vmatpush2.msra.mxu0 0.0
  %191 = vmatprep.subr.mxu0 0.0
  %192 = vmatpush2.msra.mxu0 0.0
  %193 = vmatprep.subr.mxu0 0.0
  %194 = vmatpush2.msra.mxu0 0.0
  %195 = vmatprep.subr.mxu0 0.0
  %196 = vmatpush2.msra.mxu0 0.0
  %197 = vmatprep.subr.mxu0 0.0
  %198 = vmatpush2.msra.mxu0 0.0
  %199 = vmatprep.subr.mxu0 0.0
  %200 = vmatpush2.msra.mxu0 0.0
  %201 = vmatprep.subr.mxu0 0.0
  %202 = vmatpush2.msra.mxu0 0.0
  %203 = vmatprep.subr.mxu0 0.0
  %204 = vmatpush2.msra.mxu0 0.0
  %205 = vmatprep.subr.mxu0 0.0
  %206 = vmatpush2.msra.mxu0 0.0
  %207 = vmatprep.subr.mxu0 0.0
  %208 = vmatpush2.msra.mxu0 0.0
  %209 = vmatprep.subr.mxu0 0.0
  %210 = vmatpush2.msra.mxu0 0.0
  %211 = vmatprep.subr.mxu0 0.0
  %212 = vmatpush2.msra.mxu0 0.0
  %213 = vmatprep.subr.mxu0 0.0
  %214 = vmatpush2.msra.mxu0 0.0
  %215 = vmatprep.mubr.f32.mxu0 0.0
  %216 = vmatmul.mubr.f32.gmra.mxu0 %v149
  %v217 = vpop.f32.mrf.mxu0
  %v218 = vadd.f32 %v145, %v217
  %v219 = vpop.f32.mrf.mxu0
  %220 = vdwg.mxu0
  %v221 = vld [vmem:[%s2 + $0x2] sm:$0x1]
  %222 = vset.pattern.permute.xlu0 2
  %223 = vperm.xlu0 %222, %v32
  %v224 = vpop.permute.xlu0 %223
  %v226 = vlaneseq
  %v227 = vshrl.u32 %v226, 7
  %v228 = vsub.s32 0, %v227
  %v229 = vrot.slane %v221, %v228
  %v230 = vmul.f32 %v224, %v229
  %v231 = vld [vmem:[%s3 + $0x2] sm:$0x1]
  %v232 = vlaneseq
  %v233 = vshrl.u32 %v232, 7
  %v234 = vsub.s32 0, %v233
  %v235 = vrot.slane %v231, %v234
  %v236 = vadd.f32 %v230, %v235
  %v237 = vld [vmem:[%s6 + $0x40] sm:$0xff]
  %v238 = vld [vmem:[%s6 + $0x48] sm:$0xff]
  %v239 = vld [vmem:[%s6 + $0x50] sm:$0xff]
  %v240 = vld [vmem:[%s6 + $0x58] sm:$0xff]
  %v242 = vsel %vm74, %v236, 0
  %244 = vmatprep.subr.mxu0 0.0
  %245 = vmatpush1.msra.mxu0 0.0
  %246 = vmatprep.subr.mxu0 0.0
  %247 = vmatpush1.msra.mxu0 0.0
  %248 = vmatprep.subr.mxu0 0.0
  %249 = vmatpush1.msra.mxu0 0.0
  %250 = vmatprep.subr.mxu0 0.0
  %251 = vmatpush1.msra.mxu0 0.0
  %252 = vmatprep.subr.mxu0 0.0
  %253 = vmatpush1.msra.mxu0 0.0
  %254 = vmatprep.subr.mxu0 0.0
  %255 = vmatpush1.msra.mxu0 0.0
  %256 = vmatprep.subr.mxu0 0.0
  %257 = vmatpush1.msra.mxu0 0.0
  %258 = vmatprep.subr.mxu0 0.0
  %259 = vmatpush1.msra.mxu0 0.0
  %260 = vmatprep.subr.mxu0 0.0
  %261 = vmatpush1.msra.mxu0 0.0
  %262 = vmatprep.subr.mxu0 0.0
  %263 = vmatpush1.msra.mxu0 0.0
  %264 = vmatprep.subr.mxu0 0.0
  %265 = vmatpush1.msra.mxu0 0.0
  %266 = vmatprep.subr.mxu0 0.0
  %267 = vmatpush1.msra.mxu0 0.0
  %268 = vmatprep.subr.mxu0 0.0
  %269 = vmatpush1.msra.mxu0 %v240
  %270 = vmatprep.subr.mxu0 0.0
  %271 = vmatpush1.msra.mxu0 %v239
  %272 = vmatprep.subr.mxu0 0.0
  %273 = vmatpush1.msra.mxu0 %v238
  %274 = vmatprep.subr.mxu0 0.0
  %275 = vmatpush1.msra.mxu0 %v237
  %276 = vmatprep.subr.mxu0 0.0
  %277 = vmatpush2.msra.mxu0 0.0
  %278 = vmatprep.subr.mxu0 0.0
  %279 = vmatpush2.msra.mxu0 0.0
  %280 = vmatprep.subr.mxu0 0.0
  %281 = vmatpush2.msra.mxu0 0.0
  %282 = vmatprep.subr.mxu0 0.0
  %283 = vmatpush2.msra.mxu0 0.0
  %284 = vmatprep.subr.mxu0 0.0
  %285 = vmatpush2.msra.mxu0 0.0
  %286 = vmatprep.subr.mxu0 0.0
  %287 = vmatpush2.msra.mxu0 0.0
  %288 = vmatprep.subr.mxu0 0.0
  %289 = vmatpush2.msra.mxu0 0.0
  %290 = vmatprep.subr.mxu0 0.0
  %291 = vmatpush2.msra.mxu0 0.0
  %292 = vmatprep.subr.mxu0 0.0
  %293 = vmatpush2.msra.mxu0 0.0
  %294 = vmatprep.subr.mxu0 0.0
  %295 = vmatpush2.msra.mxu0 0.0
  %296 = vmatprep.subr.mxu0 0.0
  %297 = vmatpush2.msra.mxu0 0.0
  %298 = vmatprep.subr.mxu0 0.0
  %299 = vmatpush2.msra.mxu0 0.0
  %300 = vmatprep.subr.mxu0 0.0
  %301 = vmatpush2.msra.mxu0 0.0
  %302 = vmatprep.subr.mxu0 0.0
  %303 = vmatpush2.msra.mxu0 0.0
  %304 = vmatprep.subr.mxu0 0.0
  %305 = vmatpush2.msra.mxu0 0.0
  %306 = vmatprep.subr.mxu0 0.0
  %307 = vmatpush2.msra.mxu0 0.0
  %308 = vmatprep.mubr.f32.mxu0 0.0
  %309 = vmatmul.mubr.f32.gmra.mxu0 %v242
  %v310 = vpop.f32.mrf.mxu0
  %v311 = vadd.f32 0.0, %v310
  %v312 = vpop.f32.mrf.mxu0
  %313 = vdwg.mxu0
  %v314 = vadd.f32 %v218, %v311
  %v315 = vld [vmem:[%s1] sm:$0xff]
  %v316 = vlaneseq
  %v317 = vand.u32 %v316, 127
  %318 = vset.pattern.permute.xlu0 0
  %319 = vperm.xlu0 %318, %v315
  %v320 = vpop.permute.xlu0 %319
  %vm321 = vcmp.eq.s32.totalorder %v317, %v320
  %v322 = vsel %vm321, 1, 0
  %v323 = vcvt.s32.f32 %v322
  %v324 = vld [vmem:[%s4] sm:$0xff]
  %v325 = vld [vmem:[%s4 + $0x8] sm:$0xff]
  %vm326 = vcmask 130048
  %v328 = vsel %vm326, %v323, 0
  %330 = vmatprep.subr.mxu0 0.0
  %331 = vmatpush1.msra.mxu0 0.0
  %332 = vmatprep.subr.mxu0 0.0
  %333 = vmatpush1.msra.mxu0 0.0
  %334 = vmatprep.subr.mxu0 0.0
  %335 = vmatpush1.msra.mxu0 0.0
  %336 = vmatprep.subr.mxu0 0.0
  %337 = vmatpush1.msra.mxu0 0.0
  %338 = vmatprep.subr.mxu0 0.0
  %339 = vmatpush1.msra.mxu0 0.0
  %340 = vmatprep.subr.mxu0 0.0
  %341 = vmatpush1.msra.mxu0 0.0
  %342 = vmatprep.subr.mxu0 0.0
  %343 = vmatpush1.msra.mxu0 0.0
  %344 = vmatprep.subr.mxu0 0.0
  %345 = vmatpush1.msra.mxu0 0.0
  %346 = vmatprep.subr.mxu0 0.0
  %347 = vmatpush1.msra.mxu0 0.0
  %348 = vmatprep.subr.mxu0 0.0
  %349 = vmatpush1.msra.mxu0 0.0
  %350 = vmatprep.subr.mxu0 0.0
  %351 = vmatpush1.msra.mxu0 0.0
  %352 = vmatprep.subr.mxu0 0.0
  %353 = vmatpush1.msra.mxu0 0.0
  %354 = vmatprep.subr.mxu0 0.0
  %355 = vmatpush1.msra.mxu0 0.0
  %356 = vmatprep.subr.mxu0 0.0
  %357 = vmatpush1.msra.mxu0 0.0
  %358 = vmatprep.subr.mxu0 0.0
  %359 = vmatpush1.msra.mxu0 %v325
  %360 = vmatprep.subr.mxu0 0.0
  %361 = vmatpush1.msra.mxu0 %v324
  %362 = vmatprep.subr.mxu0 0.0
  %363 = vmatpush2.msra.mxu0 0.0
  %364 = vmatprep.subr.mxu0 0.0
  %365 = vmatpush2.msra.mxu0 0.0
  %366 = vmatprep.subr.mxu0 0.0
  %367 = vmatpush2.msra.mxu0 0.0
  %368 = vmatprep.subr.mxu0 0.0
  %369 = vmatpush2.msra.mxu0 0.0
  %370 = vmatprep.subr.mxu0 0.0
  %371 = vmatpush2.msra.mxu0 0.0
  %372 = vmatprep.subr.mxu0 0.0
  %373 = vmatpush2.msra.mxu0 0.0
  %374 = vmatprep.subr.mxu0 0.0
  %375 = vmatpush2.msra.mxu0 0.0
  %376 = vmatprep.subr.mxu0 0.0
  %377 = vmatpush2.msra.mxu0 0.0
  %378 = vmatprep.subr.mxu0 0.0
  %379 = vmatpush2.msra.mxu0 0.0
  %380 = vmatprep.subr.mxu0 0.0
  %381 = vmatpush2.msra.mxu0 0.0
  %382 = vmatprep.subr.mxu0 0.0
  %383 = vmatpush2.msra.mxu0 0.0
  %384 = vmatprep.subr.mxu0 0.0
  %385 = vmatpush2.msra.mxu0 0.0
  %386 = vmatprep.subr.mxu0 0.0
  %387 = vmatpush2.msra.mxu0 0.0
  %388 = vmatprep.subr.mxu0 0.0
  %389 = vmatpush2.msra.mxu0 0.0
  %390 = vmatprep.subr.mxu0 0.0
  %391 = vmatpush2.msra.mxu0 0.0
  %392 = vmatprep.subr.mxu0 0.0
  %393 = vmatpush2.msra.mxu0 0.0
  %394 = vmatprep.mubr.f32.mxu0 0.0
  %395 = vmatmul.mubr.f32.gmra.mxu0 %v328
  %v396 = vpop.f32.mrf.mxu0
  %v397 = vadd.f32 0.0, %v396
  %v398 = vpop.f32.mrf.mxu0
  %399 = vdwg.mxu0
  %v400 = vld [vmem:[%s6 + $0x60] sm:$0xff]
  %v401 = vld [vmem:[%s6 + $0x68] sm:$0xff]
  %v402 = vld [vmem:[%s6 + $0x70] sm:$0xff]
  %v403 = vld [vmem:[%s6 + $0x78] sm:$0xff]
  %v405 = vsel %vm74, %v397, 0
  %407 = vmatprep.subr.mxu0 0.0
  %408 = vmatpush1.msra.mxu0 0.0
  %409 = vmatprep.subr.mxu0 0.0
  %410 = vmatpush1.msra.mxu0 0.0
  %411 = vmatprep.subr.mxu0 0.0
  %412 = vmatpush1.msra.mxu0 0.0
  %413 = vmatprep.subr.mxu0 0.0
  %414 = vmatpush1.msra.mxu0 0.0
  %415 = vmatprep.subr.mxu0 0.0
  %416 = vmatpush1.msra.mxu0 0.0
  %417 = vmatprep.subr.mxu0 0.0
  %418 = vmatpush1.msra.mxu0 0.0
  %419 = vmatprep.subr.mxu0 0.0
  %420 = vmatpush1.msra.mxu0 0.0
  %421 = vmatprep.subr.mxu0 0.0
  %422 = vmatpush1.msra.mxu0 0.0
  %423 = vmatprep.subr.mxu0 0.0
  %424 = vmatpush1.msra.mxu0 0.0
  %425 = vmatprep.subr.mxu0 0.0
  %426 = vmatpush1.msra.mxu0 0.0
  %427 = vmatprep.subr.mxu0 0.0
  %428 = vmatpush1.msra.mxu0 0.0
  %429 = vmatprep.subr.mxu0 0.0
  %430 = vmatpush1.msra.mxu0 0.0
  %431 = vmatprep.subr.mxu0 0.0
  %432 = vmatpush1.msra.mxu0 %v403
  %433 = vmatprep.subr.mxu0 0.0
  %434 = vmatpush1.msra.mxu0 %v402
  %435 = vmatprep.subr.mxu0 0.0
  %436 = vmatpush1.msra.mxu0 %v401
  %437 = vmatprep.subr.mxu0 0.0
  %438 = vmatpush1.msra.mxu0 %v400
  %439 = vmatprep.subr.mxu0 0.0
  %440 = vmatpush2.msra.mxu0 0.0
  %441 = vmatprep.subr.mxu0 0.0
  %442 = vmatpush2.msra.mxu0 0.0
  %443 = vmatprep.subr.mxu0 0.0
  %444 = vmatpush2.msra.mxu0 0.0
  %445 = vmatprep.subr.mxu0 0.0
  %446 = vmatpush2.msra.mxu0 0.0
  %447 = vmatprep.subr.mxu0 0.0
  %448 = vmatpush2.msra.mxu0 0.0
  %449 = vmatprep.subr.mxu0 0.0
  %450 = vmatpush2.msra.mxu0 0.0
  %451 = vmatprep.subr.mxu0 0.0
  %452 = vmatpush2.msra.mxu0 0.0
  %453 = vmatprep.subr.mxu0 0.0
  %454 = vmatpush2.msra.mxu0 0.0
  %455 = vmatprep.subr.mxu0 0.0
  %456 = vmatpush2.msra.mxu0 0.0
  %457 = vmatprep.subr.mxu0 0.0
  %458 = vmatpush2.msra.mxu0 0.0
  %459 = vmatprep.subr.mxu0 0.0
  %460 = vmatpush2.msra.mxu0 0.0
  %461 = vmatprep.subr.mxu0 0.0
  %462 = vmatpush2.msra.mxu0 0.0
  %463 = vmatprep.subr.mxu0 0.0
  %464 = vmatpush2.msra.mxu0 0.0
  %465 = vmatprep.subr.mxu0 0.0
  %466 = vmatpush2.msra.mxu0 0.0
  %467 = vmatprep.subr.mxu0 0.0
  %468 = vmatpush2.msra.mxu0 0.0
  %469 = vmatprep.subr.mxu0 0.0
  %470 = vmatpush2.msra.mxu0 0.0
  %471 = vmatprep.mubr.f32.mxu0 0.0
  %472 = vmatmul.mubr.f32.gmra.mxu0 %v405
  %v473 = vpop.f32.mrf.mxu0
  %v474 = vadd.f32 0.0, %v473
  %v475 = vpop.f32.mrf.mxu0
  %476 = vdwg.mxu0
  %v477 = vadd.f32 %v314, %v474
  %478 = vset.pattern.permute.xlu0 1
  %479 = vperm.xlu0 %478, %v315
  %v480 = vpop.permute.xlu0 %479
  %vm481 = vcmp.eq.s32.totalorder %v317, %v480
  %v482 = vsel %vm481, 1, 0
  %v483 = vcvt.s32.f32 %v482
  %v484 = vld [vmem:[%s5] sm:$0xff]
  %v485 = vld [vmem:[%s5 + $0x8] sm:$0xff]
  %v486 = vld [vmem:[%s5 + $0x10] sm:$0xff]
  %vm487 = vcmask 195584
  %v489 = vsel %vm487, %v483, 0
  %491 = vmatprep.subr.mxu0 0.0
  %492 = vmatpush1.msra.mxu0 0.0
  %493 = vmatprep.subr.mxu0 0.0
  %494 = vmatpush1.msra.mxu0 0.0
  %495 = vmatprep.subr.mxu0 0.0
  %496 = vmatpush1.msra.mxu0 0.0
  %497 = vmatprep.subr.mxu0 0.0
  %498 = vmatpush1.msra.mxu0 0.0
  %499 = vmatprep.subr.mxu0 0.0
  %500 = vmatpush1.msra.mxu0 0.0
  %501 = vmatprep.subr.mxu0 0.0
  %502 = vmatpush1.msra.mxu0 0.0
  %503 = vmatprep.subr.mxu0 0.0
  %504 = vmatpush1.msra.mxu0 0.0
  %505 = vmatprep.subr.mxu0 0.0
  %506 = vmatpush1.msra.mxu0 0.0
  %507 = vmatprep.subr.mxu0 0.0
  %508 = vmatpush1.msra.mxu0 0.0
  %509 = vmatprep.subr.mxu0 0.0
  %510 = vmatpush1.msra.mxu0 0.0
  %511 = vmatprep.subr.mxu0 0.0
  %512 = vmatpush1.msra.mxu0 0.0
  %513 = vmatprep.subr.mxu0 0.0
  %514 = vmatpush1.msra.mxu0 0.0
  %515 = vmatprep.subr.mxu0 0.0
  %516 = vmatpush1.msra.mxu0 0.0
  %517 = vmatprep.subr.mxu0 0.0
  %518 = vmatpush1.msra.mxu0 %v486
  %519 = vmatprep.subr.mxu0 0.0
  %520 = vmatpush1.msra.mxu0 %v485
  %521 = vmatprep.subr.mxu0 0.0
  %522 = vmatpush1.msra.mxu0 %v484
  %523 = vmatprep.subr.mxu0 0.0
  %524 = vmatpush2.msra.mxu0 0.0
  %525 = vmatprep.subr.mxu0 0.0
  %526 = vmatpush2.msra.mxu0 0.0
  %527 = vmatprep.subr.mxu0 0.0
  %528 = vmatpush2.msra.mxu0 0.0
  %529 = vmatprep.subr.mxu0 0.0
  %530 = vmatpush2.msra.mxu0 0.0
  %531 = vmatprep.subr.mxu0 0.0
  %532 = vmatpush2.msra.mxu0 0.0
  %533 = vmatprep.subr.mxu0 0.0
  %534 = vmatpush2.msra.mxu0 0.0
  %535 = vmatprep.subr.mxu0 0.0
  %536 = vmatpush2.msra.mxu0 0.0
  %537 = vmatprep.subr.mxu0 0.0
  %538 = vmatpush2.msra.mxu0 0.0
  %539 = vmatprep.subr.mxu0 0.0
  %540 = vmatpush2.msra.mxu0 0.0
  %541 = vmatprep.subr.mxu0 0.0
  %542 = vmatpush2.msra.mxu0 0.0
  %543 = vmatprep.subr.mxu0 0.0
  %544 = vmatpush2.msra.mxu0 0.0
  %545 = vmatprep.subr.mxu0 0.0
  %546 = vmatpush2.msra.mxu0 0.0
  %547 = vmatprep.subr.mxu0 0.0
  %548 = vmatpush2.msra.mxu0 0.0
  %549 = vmatprep.subr.mxu0 0.0
  %550 = vmatpush2.msra.mxu0 0.0
  %551 = vmatprep.subr.mxu0 0.0
  %552 = vmatpush2.msra.mxu0 0.0
  %553 = vmatprep.subr.mxu0 0.0
  %554 = vmatpush2.msra.mxu0 0.0
  %555 = vmatprep.mubr.f32.mxu0 0.0
  %556 = vmatmul.mubr.f32.gmra.mxu0 %v489
  %v557 = vpop.f32.mrf.mxu0
  %v558 = vadd.f32 0.0, %v557
  %v559 = vpop.f32.mrf.mxu0
  %560 = vdwg.mxu0
  %v561 = vld [vmem:[%s6 + $0x80] sm:$0xff]
  %v562 = vld [vmem:[%s6 + $0x88] sm:$0xff]
  %v563 = vld [vmem:[%s6 + $0x90] sm:$0xff]
  %v564 = vld [vmem:[%s6 + $0x98] sm:$0xff]
  %v566 = vsel %vm74, %v558, 0
  %568 = vmatprep.subr.mxu0 0.0
  %569 = vmatpush1.msra.mxu0 0.0
  %570 = vmatprep.subr.mxu0 0.0
  %571 = vmatpush1.msra.mxu0 0.0
  %572 = vmatprep.subr.mxu0 0.0
  %573 = vmatpush1.msra.mxu0 0.0
  %574 = vmatprep.subr.mxu0 0.0
  %575 = vmatpush1.msra.mxu0 0.0
  %576 = vmatprep.subr.mxu0 0.0
  %577 = vmatpush1.msra.mxu0 0.0
  %578 = vmatprep.subr.mxu0 0.0
  %579 = vmatpush1.msra.mxu0 0.0
  %580 = vmatprep.subr.mxu0 0.0
  %581 = vmatpush1.msra.mxu0 0.0
  %582 = vmatprep.subr.mxu0 0.0
  %583 = vmatpush1.msra.mxu0 0.0
  %584 = vmatprep.subr.mxu0 0.0
  %585 = vmatpush1.msra.mxu0 0.0
  %586 = vmatprep.subr.mxu0 0.0
  %587 = vmatpush1.msra.mxu0 0.0
  %588 = vmatprep.subr.mxu0 0.0
  %589 = vmatpush1.msra.mxu0 0.0
  %590 = vmatprep.subr.mxu0 0.0
  %591 = vmatpush1.msra.mxu0 0.0
  %592 = vmatprep.subr.mxu0 0.0
  %593 = vmatpush1.msra.mxu0 %v564
  %594 = vmatprep.subr.mxu0 0.0
  %595 = vmatpush1.msra.mxu0 %v563
  %596 = vmatprep.subr.mxu0 0.0
  %597 = vmatpush1.msra.mxu0 %v562
  %598 = vmatprep.subr.mxu0 0.0
  %599 = vmatpush1.msra.mxu0 %v561
  %600 = vmatprep.subr.mxu0 0.0
  %601 = vmatpush2.msra.mxu0 0.0
  %602 = vmatprep.subr.mxu0 0.0
  %603 = vmatpush2.msra.mxu0 0.0
  %604 = vmatprep.subr.mxu0 0.0
  %605 = vmatpush2.msra.mxu0 0.0
  %606 = vmatprep.subr.mxu0 0.0
  %607 = vmatpush2.msra.mxu0 0.0
  %608 = vmatprep.subr.mxu0 0.0
  %609 = vmatpush2.msra.mxu0 0.0
  %610 = vmatprep.subr.mxu0 0.0
  %611 = vmatpush2.msra.mxu0 0.0
  %612 = vmatprep.subr.mxu0 0.0
  %613 = vmatpush2.msra.mxu0 0.0
  %614 = vmatprep.subr.mxu0 0.0
  %615 = vmatpush2.msra.mxu0 0.0
  %616 = vmatprep.subr.mxu0 0.0
  %617 = vmatpush2.msra.mxu0 0.0
  %618 = vmatprep.subr.mxu0 0.0
  %619 = vmatpush2.msra.mxu0 0.0
  %620 = vmatprep.subr.mxu0 0.0
  %621 = vmatpush2.msra.mxu0 0.0
  %622 = vmatprep.subr.mxu0 0.0
  %623 = vmatpush2.msra.mxu0 0.0
  %624 = vmatprep.subr.mxu0 0.0
  %625 = vmatpush2.msra.mxu0 0.0
  %626 = vmatprep.subr.mxu0 0.0
  %627 = vmatpush2.msra.mxu0 0.0
  %628 = vmatprep.subr.mxu0 0.0
  %629 = vmatpush2.msra.mxu0 0.0
  %630 = vmatprep.subr.mxu0 0.0
  %631 = vmatpush2.msra.mxu0 0.0
  %632 = vmatprep.mubr.f32.mxu0 0.0
  %633 = vmatmul.mubr.f32.gmra.mxu0 %v566
  %v634 = vpop.f32.mrf.mxu0
  %v635 = vadd.f32 0.0, %v634
  %v636 = vpop.f32.mrf.mxu0
  %637 = vdwg.mxu0
  %v638 = vadd.f32 %v477, %v635
  %v639 = vld [vmem:[%s7] sm:$0x1]
  %v641 = vlaneseq
  %v642 = vshrl.u32 %v641, 7
  %v643 = vsub.s32 0, %v642
  %v644 = vrot.slane %v639, %v643
  %v646 = vadd.f32 %v638, %v644
  %v647 = vmax.f32 %v646, 0.0
  %v648 = vld [vmem:[%s8] sm:$0x1]
  %649 = vmatprep.subr.mxu0 0.0
  %650 = vmatpush1.xpose.msra.mxu0 0.0
  %651 = vmatprep.subr.mxu0 0.0
  %652 = vmatpush1.xpose.msra.mxu0 0.0
  %653 = vmatprep.subr.mxu0 0.0
  %654 = vmatpush1.xpose.msra.mxu0 0.0
  %655 = vmatprep.subr.mxu0 0.0
  %656 = vmatpush1.xpose.msra.mxu0 0.0
  %657 = vmatprep.subr.mxu0 0.0
  %658 = vmatpush1.xpose.msra.mxu0 0.0
  %659 = vmatprep.subr.mxu0 0.0
  %660 = vmatpush1.xpose.msra.mxu0 0.0
  %661 = vmatprep.subr.mxu0 0.0
  %662 = vmatpush1.xpose.msra.mxu0 0.0
  %663 = vmatprep.subr.mxu0 0.0
  %664 = vmatpush1.xpose.msra.mxu0 0.0
  %665 = vmatprep.subr.mxu0 0.0
  %666 = vmatpush1.xpose.msra.mxu0 0.0
  %667 = vmatprep.subr.mxu0 0.0
  %668 = vmatpush1.xpose.msra.mxu0 0.0
  %669 = vmatprep.subr.mxu0 0.0
  %670 = vmatpush1.xpose.msra.mxu0 0.0
  %671 = vmatprep.subr.mxu0 0.0
  %672 = vmatpush1.xpose.msra.mxu0 0.0
  %673 = vmatprep.subr.mxu0 0.0
  %674 = vmatpush1.xpose.msra.mxu0 0.0
  %675 = vmatprep.subr.mxu0 0.0
  %676 = vmatpush1.xpose.msra.mxu0 0.0
  %677 = vmatprep.subr.mxu0 0.0
  %678 = vmatpush1.xpose.msra.mxu0 0.0
  %679 = vmatprep.subr.mxu0 0.0
  %680 = vmatpush1.xpose.msra.mxu0 %v647
  %681 = vmatprep.subr.mxu0 0.0
  %682 = vmatpush2.xpose.msra.mxu0 0.0
  %683 = vmatprep.subr.mxu0 0.0
  %684 = vmatpush2.xpose.msra.mxu0 0.0
  %685 = vmatprep.subr.mxu0 0.0
  %686 = vmatpush2.xpose.msra.mxu0 0.0
  %687 = vmatprep.subr.mxu0 0.0
  %688 = vmatpush2.xpose.msra.mxu0 0.0
  %689 = vmatprep.subr.mxu0 0.0
  %690 = vmatpush2.xpose.msra.mxu0 0.0
  %691 = vmatprep.subr.mxu0 0.0
  %692 = vmatpush2.xpose.msra.mxu0 0.0
  %693 = vmatprep.subr.mxu0 0.0
  %694 = vmatpush2.xpose.msra.mxu0 0.0
  %695 = vmatprep.subr.mxu0 0.0
  %696 = vmatpush2.xpose.msra.mxu0 0.0
  %697 = vmatprep.subr.mxu0 0.0
  %698 = vmatpush2.xpose.msra.mxu0 0.0
  %699 = vmatprep.subr.mxu0 0.0
  %700 = vmatpush2.xpose.msra.mxu0 0.0
  %701 = vmatprep.subr.mxu0 0.0
  %702 = vmatpush2.xpose.msra.mxu0 0.0
  %703 = vmatprep.subr.mxu0 0.0
  %704 = vmatpush2.xpose.msra.mxu0 0.0
  %705 = vmatprep.subr.mxu0 0.0
  %706 = vmatpush2.xpose.msra.mxu0 0.0
  %707 = vmatprep.subr.mxu0 0.0
  %708 = vmatpush2.xpose.msra.mxu0 0.0
  %709 = vmatprep.subr.mxu0 0.0
  %710 = vmatpush2.xpose.msra.mxu0 0.0
  %711 = vmatprep.subr.mxu0 0.0
  %712 = vmatpush2.xpose.msra.mxu0 0.0
  %713 = vmatprep.mubr.f32.mxu0 0.0
  %714 = vmatmul.mubr.f32.gmra.mxu0 %v648
  %v715 = vpop.f32.mrf.mxu0
  %v716 = vadd.f32 0.0, %v715
  %v717 = vpop.f32.mrf.mxu0
  %718 = vdwg.mxu0
  %vm719 = vcmask 57344
  %720 = vst.msk [vmem:[%s9] sm:$0x1] %vm719, %v716
  // Predicated region
  $region38: #{tabnn_forward.1} parent=0 // pred_check
    _
  $region39: #{tabnn_forward.1} parent=0 // pred_check_branch
    %722 = sbr.rel (0) target = $region41
  $region40: #{tabnn_forward.1} parent=0 // pred_region
    _
  $region41: #{tabnn_forward.1} parent=0 // pred_fallthru
    _
  // Predicated region
  $region42: #{tabnn_forward.1} parent=0 // pred_check
    _
  $region43: #{tabnn_forward.1} parent=0 // pred_check_branch
    %724 = sbr.rel (0) target = $region45
  $region44: #{tabnn_forward.1} parent=0 // pred_region
    _
  $region45: #{tabnn_forward.1} parent=0 // pred_fallthru
    _

</llo_original>
